<compile_context>
chip_gen: v6e
topology: v6e:2x2x1
jax: 0.10.0
libtpu: 0.0.40
codegen_flags: <defaults>
</compile_context>

<pallas_src>
import jax
import jax.numpy as jnp
from jax.experimental import pallas as pl
from jax.experimental.pallas import tpu as pltpu


_LANE_W = 1024            # lane-dense slab width (8 full f32 vregs per row)
_TM = 1024                # rows per tile -> 4 MiB f32 tiles
_VMEM_LIMIT = 32 << 20    # covers 16 MiB resident (in+out, double-buffered) on all gens


def _linear_kernel(w_ref, b_ref, x_ref, o_ref):
    # w_ref: (1, 1) in SMEM, b_ref: (1,) in SMEM, x_ref/o_ref: (tm, LANE_W) in VMEM.
    w = w_ref[0, 0]
    b = b_ref[0]
    # One VPU fused multiply-add per vreg; exactly one unmasked store per vreg.
    o_ref[...] = x_ref[...] * w + b


def linear_regression_model2(x: jax.Array, weight: jax.Array, bias: jax.Array) -> jax.Array:
    """Forward pass of nn.Linear(in_features=1, out_features=1).

    x:      (..., 1) float32 (any shape; last dim is the single feature)
    weight: (1, 1)   float32
    bias:   (1,)     float32
    returns same shape as x, float32
    """
    orig_shape = x.shape
    n = x.size
    w = weight[0, 0]
    b = bias[0]

    # Ragged (not a multiple of the slab width) or empty inputs: one fused XLA
    # pass, no pad / trim copies.  This is at least as fast as any kernel for
    # these cases because the op is purely HBM-bandwidth bound.
    if n == 0 or (n % _LANE_W) != 0:
        return x * w + b

    rows = n // _LANE_W
    x2 = x.reshape(rows, _LANE_W)          # contiguous reshape -> free view, no HBM pass
    tm = min(_TM, rows)                    # block == full array for small inputs
    grid = (pl.cdiv(rows, tm),)            # Pallas masks the partial last row-block

    out = pl.pallas_call(
        _linear_kernel,
        out_shape=jax.ShapeDtypeStruct((rows, _LANE_W), x.dtype),
        grid=grid,
        in_specs=[
            pl.BlockSpec(memory_space=pltpu.SMEM),            # weight (1, 1) scalar
            pl.BlockSpec(memory_space=pltpu.SMEM),            # bias   (1,)  scalar
            pl.BlockSpec((tm, _LANE_W), lambda i: (i, 0)),    # x tile
        ],
        out_specs=pl.BlockSpec((tm, _LANE_W), lambda i: (i, 0)),
        compiler_params=pltpu.CompilerParams(
            dimension_semantics=("parallel",),                # shard row tiles across TCs (v7x)
            vmem_limit_bytes=_VMEM_LIMIT,
        ),
        cost_estimate=pl.CostEstimate(
            flops=2 * rows * _LANE_W,                         # one mul + one add per element
            transcendentals=0,
            bytes_accessed=2 * 4 * rows * _LANE_W,            # f32 read + f32 write
        ),
    )(weight, bias, x2)

    # Free reshape back to the caller's shape (no trimming needed: n == rows * 1024).
    return out.reshape(orig_shape)


if __name__ == "__main__":
    key = jax.random.PRNGKey(0)
    k_w, k_b, k_x = jax.random.split(key, 3)

    # Parameter init mirroring nn.Linear(1, 1):
    # uniform(-1/sqrt(in_features), 1/sqrt(in_features)) with in_features = 1.
    weight = jax.random.uniform(k_w, (1, 1), jnp.float32, minval=-1.0, maxval=1.0)
    bias = jax.random.uniform(k_b, (1,), jnp.float32, minval=-1.0, maxval=1.0)

    # Small batch whose size is a multiple of the 1024-lane slab width, so the
    # Pallas kernel path is exercised (rows = 2, one full-array block).
    x = jax.random.normal(k_x, (2048, 1), jnp.float32)
    y = jax.block_until_ready(linear_regression_model2(x, weight, bias))
    y_ref = x @ weight.T + bias
    assert y.shape == x.shape
    assert jnp.allclose(y, y_ref, atol=1e-6), "mismatch vs reference (kernel path)"

    # Ragged tiny batch -> fused XLA fallback path (no pad/trim copies).
    x_small = jax.random.normal(jax.random.fold_in(key, 1), (8, 1), jnp.float32)
    y_small = jax.block_until_ready(linear_regression_model2(x_small, weight, bias))
    assert y_small.shape == x_small.shape
    assert jnp.allclose(y_small, x_small @ weight.T + bias, atol=1e-6), \
        "mismatch vs reference (fallback path)"

    # Multi-tile kernel path with a partial last row-block (1536 rows of 1024
    # lanes -> grid of 2, second block half-masked).
    x_big = jax.random.normal(jax.random.fold_in(key, 2), (1536 * 1024, 1), jnp.float32)
    y_big = jax.block_until_ready(linear_regression_model2(x_big, weight, bias))
    assert y_big.shape == x_big.shape
    assert jnp.allclose(y_big, x_big @ weight.T + bias, atol=1e-5), \
        "mismatch vs reference (tiled / partial-block path)"

    print("KERNEL_OK")
</pallas_src>

<mosaic_0001>
module attributes {stable_mosaic.version = 11 : i64} {
  func.func @_linear_kernel(%arg0: i32, %arg1: memref<1x1xf32, #tpu.memory_space<smem>>, %arg2: memref<1xf32, #tpu.memory_space<smem>>, %arg3: memref<2x1024xf32, #tpu.memory_space<vmem>>, %arg4: memref<2x1024xf32, #tpu.memory_space<vmem>>) attributes {dimension_semantics = [#tpu.dimension_semantics<parallel>], iteration_bounds = array<i64: 1>, scalar_prefetch = 0 : i64, scratch_operands = 0 : i64, tpu.core_type = #tpu.core_type<tc>, window_params = [{transform_indices = @transform_0, window_bounds = array<i64: 1, 1>}, {transform_indices = @transform_1, window_bounds = array<i64: 1>}, {transform_indices = @transform_2, window_bounds = array<i64: 2, 1024>}, {transform_indices = @transform_3, window_bounds = array<i64: 2, 1024>}]} {
    %c0 = arith.constant 0 : index
    %c0_0 = arith.constant 0 : index
    %0 = memref.load %arg1[%c0, %c0_0] : memref<1x1xf32, #tpu.memory_space<smem>>
    %c0_1 = arith.constant 0 : index
    %1 = memref.load %arg2[%c0_1] : memref<1xf32, #tpu.memory_space<smem>>
    %c0_2 = arith.constant 0 : index
    %c0_3 = arith.constant 0 : index
    %2 = vector.load %arg3[%c0_2, %c0_3] : memref<2x1024xf32, #tpu.memory_space<vmem>>, vector<2x1024xf32>
    %3 = vector.broadcast %0 : f32 to vector<2x1024xf32>
    %4 = arith.mulf %2, %3 : vector<2x1024xf32>
    %5 = vector.broadcast %1 : f32 to vector<2x1024xf32>
    %6 = arith.addf %4, %5 : vector<2x1024xf32>
    %c0_4 = arith.constant 0 : index
    %c0_5 = arith.constant 0 : index
    %7 = vector.load %arg4[%c0_4, %c0_5] : memref<2x1024xf32, #tpu.memory_space<vmem>>, vector<2x1024xf32>
    tpu.vector_store %arg4[%c0_4, %c0_5], %6 {strides = array<i32>} : memref<2x1024xf32, #tpu.memory_space<vmem>>, vector<2x1024xf32>,
    return
  }
  func.func @transform_0(%arg0: i32) -> (i32, i32) {
    %c0_i32 = arith.constant 0 : i32
    %c0_i32_0 = arith.constant 0 : i32
    %c0_i32_1 = arith.constant 0 : i32
    return %c0_i32, %c0_i32_0 : i32, i32
  }
  func.func @transform_1(%arg0: i32) -> i32 {
    %c0_i32 = arith.constant 0 : i32
    %c0_i32_0 = arith.constant 0 : i32
    return %c0_i32 : i32
  }
  func.func @transform_2(%arg0: i32) -> (i32, i32) {
    %c0_i32 = arith.constant 0 : i32
    %c0_i32_0 = arith.constant 0 : i32
    return %arg0, %c0_i32 : i32, i32
  }
  func.func @transform_3(%arg0: i32) -> (i32, i32) {
    %c0_i32 = arith.constant 0 : i32
    %c0_i32_0 = arith.constant 0 : i32
    return %arg0, %c0_i32 : i32, i32
  }
}

</mosaic_0001>

<llo_original>
// kernel: tpu_custom_call.1
$region0: #{tpu_custom_call.1}
  #allocation0 [shape = 'u32[]', space=smem, size = 0x4, offset = 0x4, fixed_abs, tag = 'smem constant byte address 0x4 - core index']
  #allocation1 [shape = 'u32[144,128]{1,0:T(1,128)}', space=vmem, size = 0x12000, scoped, tag = 'internal scratch']
  #allocation2 [shape = 'f32[1,1]{1,0:T(1,128)S(6)}', space=smem, size = 0x200, scoped, tag = 'scoped memory for tpu_custom_call.1']
  #allocation3 [shape = 'f32[1]{0:T(128)S(6)}', space=smem, size = 0x200, scoped, tag = 'scoped memory for tpu_custom_call.1']
  %s0 = inlined_call_operand.<no memory space> [shape: f32[1,1], index: 0, kind: input, shape index: {}]
  %s1 = inlined_call_operand.<no memory space> [shape: f32[1], index: 1, kind: input, shape index: {}]
  %s2 = inlined_call_operand.hbm [shape: f32[2,1024], index: 2, kind: input, shape index: {}]
  %s3 = inlined_call_operand.hbm [shape: f32[2,1024], index: 3, kind: output, shape index: {}]
  %s4 = sld [smem:[#allocation0]]
  $region26: #{tpu_custom_call.1} parent=0
    _
  %s6 = ssub.s32 1, %s4
  %s7 = scalar_select 0, %s6, %s4
  %8 = sst [smem:[#allocation2]] %s0
  %9 = sst [smem:[#allocation3]] %s1
  $region1: #{tpu_custom_call.1} parent=0
    #allocation4 [shape = 'u8[8192]{0}', space=vmem, size = 0x2000, scoped, tag = 'input window, operand 2, single buffered']
    #allocation5 [shape = 's32[1]{0}', space=sflag, size = 0x4, scoped, tag = 'scoped memory for tpu_custom_call.1']
    #allocation6 [shape = 's32[1]{0}', space=sflag, size = 0x4, scoped, tag = 'scoped memory for tpu_custom_call.1']
    #allocation7 [shape = 'u8[8192]{0}', space=vmem, size = 0x2000, scoped, tag = 'output window, operand 0, single buffered']
    %10 = vsyncpa [#allocation5], 0
    %11 = vsyncpa [#allocation6], 0
    // Predicated region
    $region2: #{tpu_custom_call.1} parent=1 // pred_check
      _
    $region3: #{tpu_custom_call.1} parent=1 // pred_check_branch
      %13 = sbr.rel (0) target = $region5
    $region4: #{tpu_custom_call.1} parent=1 // pred_region
      _
    $region5: #{tpu_custom_call.1} parent=1 // pred_fallthru
      _
    // Predicated region
    $region6: #{tpu_custom_call.1} parent=1 // pred_check
      _
    $region7: #{tpu_custom_call.1} parent=1 // pred_check_branch
      %15 = sbr.rel (0) target = $region9
    $region8: #{tpu_custom_call.1} parent=1 // pred_region
      _
    $region9: #{tpu_custom_call.1} parent=1 // pred_fallthru
      _
    // Predicated region
    $region10: #{tpu_custom_call.1} parent=1 // pred_check
      _
    $region11: #{tpu_custom_call.1} parent=1 // pred_check_branch
      %17 = sbr.rel (0) target = $region13
    $region12: #{tpu_custom_call.1} parent=1 // pred_region
      %s19 = ssub.s32 256, 256
      %20 = vsyncadd [#allocation5], %s19
      %s22 = sshll.u32 [#allocation4], 4
      %s23 = int_to_ptr.vmem [resolvable:$true] %s22
      %25 = dma.hbm_to_vmem [thread:$0]  %s2, 256, %s23, [#allocation5]
    $region13: #{tpu_custom_call.1} parent=1 // pred_fallthru
      _
    // Predicated region
    $region14: #{tpu_custom_call.1} parent=1 // pred_check
      _
    $region15: #{tpu_custom_call.1} parent=1 // pred_check_branch
      %27 = sbr.rel (0) target = $region17
    $region16: #{tpu_custom_call.1} parent=1 // pred_region
      %28 = dma.done [#allocation5], 256
    $region17: #{tpu_custom_call.1} parent=1 // pred_fallthru
      _
    %s29 = sld [smem:[#allocation2]]
    %s30 = sld [smem:[#allocation3]]
    %v31 = vld [vmem:[#allocation4] sm:$0xff]
    %v32 = vld [vmem:[#allocation4 + $0x8] sm:$0xff]
    %v33 = vstv %s29
    %v34 = vmul.f32 %v31, %v33
    %v35 = vmul.f32 %v32, %v33
    %v36 = vstv %s30
    %v37 = vadd.f32 %v34, %v36
    %v38 = vadd.f32 %v35, %v36
    %39 = vst [vmem:[#allocation7] sm:$0xff] %v37
    %40 = vst [vmem:[#allocation7 + $0x8] sm:$0xff] %v38
    // Predicated region
    $region18: #{tpu_custom_call.1} parent=1 // pred_check
      _
    $region19: #{tpu_custom_call.1} parent=1 // pred_check_branch
      %42 = sbr.rel (0) target = $region21
    $region20: #{tpu_custom_call.1} parent=1 // pred_region
      %s44 = ssub.s32 256, 256
      %45 = vsyncadd [#allocation6], %s44
      %s47 = sshll.u32 [#allocation7], 4
      %s48 = int_to_ptr.vmem [resolvable:$true] %s47
      %50 = dma.vmem_to_hbm [thread:$0]  %s48, 256, %s3, [#allocation6]
    $region21: #{tpu_custom_call.1} parent=1 // pred_fallthru
      _
    // Predicated region
    $region22: #{tpu_custom_call.1} parent=1 // pred_check
      _
    $region23: #{tpu_custom_call.1} parent=1 // pred_check_branch
      %52 = sbr.rel (0) target = $region25
    $region24: #{tpu_custom_call.1} parent=1 // pred_region
      %53 = dma.done [#allocation6], 256
    $region25: #{tpu_custom_call.1} parent=1 // pred_fallthru
      _
    %54 = vsyncpa [#allocation5], 1
    %55 = vsyncpa [#allocation6], 1

</llo_original>
